<compile_context>
chip_gen: v7x
topology: tpu7x:2x2x1
jax: 0.10.0
libtpu: 0.0.40
codegen_flags: <defaults>
</compile_context>

<pallas_src>
import functools

import jax
import jax.numpy as jnp
from jax.experimental import pallas as pl
from jax.experimental.pallas import tpu as pltpu

BN_EPS = 1e-5


def _round_up(n, m):
    return ((n + m - 1) // m) * m


def _linres_kernel(x_ref, w1g_ref, b1_ref, w2_ref, b2_ref, gamma_ref, beta_ref,
                   o_ref, sum_ref, sumsq_ref, *, hp, n_batch, tile_b):
    phase = pl.program_id(0)      # 0: accumulate BN stats, 1: normalize + write
    bt = pl.program_id(1)         # batch-tile index

    x = x_ref[...]                                                         # [TB, Din]

    # One fused MXU pass over x: columns [0:hp) are w1, columns [hp:) are the 0/1
    # nearest-neighbor selection matrix (the bypass rides along for free).
    fused = jnp.dot(x, w1g_ref[...], preferred_element_type=jnp.float32)   # [TB, Hp+Dp]

    h = jnp.maximum(fused[:, :hp] + b1_ref[...], 0.0)                      # [TB, Hp]
    r = jnp.dot(h, w2_ref[...], preferred_element_type=jnp.float32) + b2_ref[...]  # [TB, Dp]

    @pl.when(jnp.logical_and(phase == 0, bt == 0))
    def _init():
        sum_ref[...] = jnp.zeros_like(sum_ref)
        sumsq_ref[...] = jnp.zeros_like(sumsq_ref)

    @pl.when(phase == 0)
    def _accumulate():
        # Mask out zero-padded batch rows so global BN statistics use exactly n_batch rows.
        row = bt * tile_b + jax.lax.broadcasted_iota(jnp.int32, (tile_b, 1), 0)
        mask = (row < n_batch).astype(jnp.float32)                         # [TB, 1]
        rm = r * mask
        sum_ref[...] += jnp.sum(rm, axis=0, keepdims=True)
        sumsq_ref[...] += jnp.sum(rm * r, axis=0, keepdims=True)
        o_ref[...] = jnp.zeros_like(o_ref)       # deterministic placeholder, overwritten in phase 1

    @pl.when(phase == 1)
    def _finalize():
        inv_n = 1.0 / float(n_batch)
        mean = sum_ref[...] * inv_n
        var = jnp.maximum(sumsq_ref[...] * inv_n - mean * mean, 0.0)       # biased variance
        r_bn = (r - mean) * jax.lax.rsqrt(var + BN_EPS) * gamma_ref[...] + beta_ref[...]
        bypass = fused[:, hp:]                                             # nearest-neighbor bypass
        o_ref[...] = jnp.maximum(bypass + r_bn, 0.0)


def linear_residual_block(x, w1, b1, w2, b2, gamma, beta, *, tile_b=8):
    """x: [B, in_size] f32 -> [B, out_size] f32 (LinearResidualBlock forward, BN in train mode)."""
    B, Din = x.shape
    H = w1.shape[1]
    Dout = w2.shape[1]

    Hp = _round_up(H, 128)        # lane-dense hidden width
    Dp = _round_up(Dout, 128)     # lane-dense output width
    Bp = _round_up(B, tile_b)     # batch padded to a sublane-friendly tile multiple
    n_bt = Bp // tile_b

    # Nearest-neighbor bypass indices (integer arithmetic == PyTorch floor(dst*scale)),
    # expressed as a 0/1 selection matrix and fused with w1 into one weight.
    idx = (jnp.arange(Dout) * Din) // Dout
    g = (jnp.arange(Din)[:, None] == idx[None, :]).astype(jnp.float32)     # [Din, Dout]

    w1p = jnp.zeros((Din, Hp), jnp.float32).at[:, :H].set(w1)
    gp = jnp.zeros((Din, Dp), jnp.float32).at[:, :Dout].set(g)
    w1g = jnp.concatenate([w1p, gp], axis=1)                               # [Din, Hp+Dp]

    b1p = jnp.zeros((1, Hp), jnp.float32).at[:, :H].set(b1.reshape(1, H))
    w2p = jnp.zeros((Hp, Dp), jnp.float32).at[:H, :Dout].set(w2)
    b2p = jnp.zeros((1, Dp), jnp.float32).at[:, :Dout].set(b2.reshape(1, Dout))
    gammap = jnp.zeros((1, Dp), jnp.float32).at[:, :Dout].set(gamma.reshape(1, Dout))
    betap = jnp.zeros((1, Dp), jnp.float32).at[:, :Dout].set(beta.reshape(1, Dout))

    xp = jnp.zeros((Bp, Din), jnp.float32).at[:B, :].set(x)

    kernel = functools.partial(_linres_kernel, hp=Hp, n_batch=B, tile_b=tile_b)

    out_padded = pl.pallas_call(
        kernel,
        out_shape=jax.ShapeDtypeStruct((Bp, Dp), jnp.float32),
        grid_spec=pltpu.PrefetchScalarGridSpec(
            num_scalar_prefetch=0,
            grid=(2, n_bt),   # (phase, batch tile); phase outermost so stats complete first
            in_specs=[
                pl.BlockSpec((tile_b, Din), lambda p, i: (i, 0)),     # x tile
                pl.BlockSpec((Din, Hp + Dp), lambda p, i: (0, 0)),    # fused [w1 | G]
                pl.BlockSpec((1, Hp), lambda p, i: (0, 0)),           # b1
                pl.BlockSpec((Hp, Dp), lambda p, i: (0, 0)),          # w2
                pl.BlockSpec((1, Dp), lambda p, i: (0, 0)),           # b2
                pl.BlockSpec((1, Dp), lambda p, i: (0, 0)),           # gamma
                pl.BlockSpec((1, Dp), lambda p, i: (0, 0)),           # beta
            ],
            out_specs=pl.BlockSpec((tile_b, Dp), lambda p, i: (i, 0)),
            scratch_shapes=[pltpu.VMEM((1, Dp), jnp.float32),         # running sum
                            pltpu.VMEM((1, Dp), jnp.float32)],        # running sum of squares
        ),
        compiler_params=pltpu.CompilerParams(
            # Both axes "arbitrary": the phase axis is a true dependency, and the batch
            # axis carries the global-BN accumulator in per-core scratch (a "parallel"
            # batch axis on v7x would compute per-core batch statistics).
            dimension_semantics=("arbitrary", "arbitrary"),
        ),
    )(xp, w1g, b1p, w2p, b2p, gammap, betap)

    return out_padded[:B, :Dout]


def _reference(x, w1, b1, w2, b2, gamma, beta):
    Din = x.shape[1]
    Dout = w2.shape[1]
    h = jax.nn.relu(x @ w1 + b1)
    r = h @ w2 + b2
    mean = r.mean(axis=0, keepdims=True)
    var = ((r - mean) ** 2).mean(axis=0, keepdims=True)
    r = (r - mean) / jnp.sqrt(var + BN_EPS) * gamma + beta
    idx = (jnp.arange(Dout) * Din) // Dout
    bypass = x[:, idx]
    return jax.nn.relu(bypass + r)


if __name__ == "__main__":
    # Module config: in_size=32, out_size=16, hidden_size defaults to out_size,
    # norm_type='BN', hidden_norm=False.  B=30 exercises batch padding + stat masking.
    B, IN_SIZE, OUT_SIZE = 30, 32, 16
    HIDDEN = OUT_SIZE

    key = jax.random.PRNGKey(0)
    kx, k1, k2, k3, k4, k5, k6 = jax.random.split(key, 7)

    x = jax.random.normal(kx, (B, IN_SIZE), dtype=jnp.float32)

    w1 = jax.random.normal(k1, (IN_SIZE, HIDDEN), dtype=jnp.float32) * 0.1
    b1 = jax.random.normal(k2, (HIDDEN,), dtype=jnp.float32) * 0.1
    w2 = jax.random.normal(k3, (HIDDEN, OUT_SIZE), dtype=jnp.float32) * 0.1
    b2 = jax.random.normal(k4, (OUT_SIZE,), dtype=jnp.float32) * 0.1
    gamma = 1.0 + 0.1 * jax.random.normal(k5, (OUT_SIZE,), dtype=jnp.float32)
    beta = 0.1 * jax.random.normal(k6, (OUT_SIZE,), dtype=jnp.float32)

    out = linear_residual_block(x, w1, b1, w2, b2, gamma, beta, tile_b=8)
    out = jax.block_until_ready(out)

    ref = _reference(x, w1, b1, w2, b2, gamma, beta)
    assert out.shape == (B, OUT_SIZE)
    assert jnp.allclose(out, ref, atol=1e-4, rtol=1e-4), "mismatch vs reference"

    print("KERNEL_OK")
</pallas_src>

<mosaic_0001>
module attributes {stable_mosaic.version = 11 : i64} {
  func.func @_linres_kernel(%arg0: i32, %arg1: i32, %arg2: memref<8x32xf32, #tpu.memory_space<vmem>>, %arg3: memref<32x256xf32, #tpu.memory_space<vmem>>, %arg4: memref<1x128xf32, #tpu.memory_space<vmem>>, %arg5: memref<128x128xf32, #tpu.memory_space<vmem>>, %arg6: memref<1x128xf32, #tpu.memory_space<vmem>>, %arg7: memref<1x128xf32, #tpu.memory_space<vmem>>, %arg8: memref<1x128xf32, #tpu.memory_space<vmem>>, %arg9: memref<8x128xf32, #tpu.memory_space<vmem>>, %arg10: memref<1x128xf32, #tpu.memory_space<vmem>>, %arg11: memref<1x128xf32, #tpu.memory_space<vmem>>) attributes {dimension_semantics = [#tpu.dimension_semantics<arbitrary>, #tpu.dimension_semantics<arbitrary>], iteration_bounds = array<i64: 2, 4>, scalar_prefetch = 0 : i64, scratch_operands = 2 : i64, tpu.core_type = #tpu.core_type<tc>, window_params = [{transform_indices = @transform_0, window_bounds = array<i64: 8, 32>}, {pipeline_mode = #tpu.pipeline_mode<synchronous>, transform_indices = @transform_1, window_bounds = array<i64: 32, 256>}, {pipeline_mode = #tpu.pipeline_mode<synchronous>, transform_indices = @transform_2, window_bounds = array<i64: 1, 128>}, {pipeline_mode = #tpu.pipeline_mode<synchronous>, transform_indices = @transform_3, window_bounds = array<i64: 128, 128>}, {pipeline_mode = #tpu.pipeline_mode<synchronous>, transform_indices = @transform_4, window_bounds = array<i64: 1, 128>}, {pipeline_mode = #tpu.pipeline_mode<synchronous>, transform_indices = @transform_5, window_bounds = array<i64: 1, 128>}, {pipeline_mode = #tpu.pipeline_mode<synchronous>, transform_indices = @transform_6, window_bounds = array<i64: 1, 128>}, {transform_indices = @transform_7, window_bounds = array<i64: 8, 128>}]} {
    %c0 = arith.constant 0 : index
    %c0_0 = arith.constant 0 : index
    %0 = vector.load %arg2[%c0, %c0_0] : memref<8x32xf32, #tpu.memory_space<vmem>>, vector<8x32xf32>
    %c0_1 = arith.constant 0 : index
    %c0_2 = arith.constant 0 : index
    %1 = vector.load %arg3[%c0_1, %c0_2] : memref<32x256xf32, #tpu.memory_space<vmem>>, vector<32x256xf32>
    %cst = arith.constant dense<0.000000e+00> : vector<8x256xf32>
    %2 = tpu.matmul %0, %1, %cst {dimension_numbers = #tpu.dot_dimension_numbers<[1], [0], [0], [1], [0, 0, 1, 1], [], []>} : vector<8x32xf32>, vector<32x256xf32>, vector<8x256xf32> -> vector<8x256xf32>
    %3 = vector.extract_strided_slice %2 {offsets = [0, 0], sizes = [8, 128], strides = [1, 1]} : vector<8x256xf32> to vector<8x128xf32>
    %c0_3 = arith.constant 0 : index
    %c0_4 = arith.constant 0 : index
    %4 = vector.load %arg4[%c0_3, %c0_4] : memref<1x128xf32, #tpu.memory_space<vmem>>, vector<1x128xf32>
    %5 = vector.broadcast %4 : vector<1x128xf32> to vector<8x128xf32>
    %6 = arith.addf %3, %5 : vector<8x128xf32>
    %cst_5 = arith.constant 0.000000e+00 : f32
    %7 = vector.broadcast %cst_5 : f32 to vector<8x128xf32>
    %8 = arith.maximumf %6, %7 : vector<8x128xf32>
    %c0_6 = arith.constant 0 : index
    %c0_7 = arith.constant 0 : index
    %9 = vector.load %arg5[%c0_6, %c0_7] : memref<128x128xf32, #tpu.memory_space<vmem>>, vector<128x128xf32>
    %cst_8 = arith.constant dense<0.000000e+00> : vector<8x128xf32>
    %10 = tpu.matmul %8, %9, %cst_8 {dimension_numbers = #tpu.dot_dimension_numbers<[1], [0], [0], [1], [0, 0, 1, 1], [], []>} : vector<8x128xf32>, vector<128x128xf32>, vector<8x128xf32> -> vector<8x128xf32>
    %c0_9 = arith.constant 0 : index
    %c0_10 = arith.constant 0 : index
    %11 = vector.load %arg6[%c0_9, %c0_10] : memref<1x128xf32, #tpu.memory_space<vmem>>, vector<1x128xf32>
    %12 = vector.broadcast %11 : vector<1x128xf32> to vector<8x128xf32>
    %13 = arith.addf %10, %12 : vector<8x128xf32>
    %c0_i32 = arith.constant 0 : i32
    %14 = arith.cmpi eq, %arg0, %c0_i32 : i32
    %c0_i32_11 = arith.constant 0 : i32
    %15 = arith.cmpi eq, %arg1, %c0_i32_11 : i32
    %16 = arith.andi %14, %15 : i1
    %17 = arith.extui %16 : i1 to i32
    %c0_i32_12 = arith.constant 0 : i32
    %18 = arith.cmpi ne, %17, %c0_i32_12 : i32
    scf.if %18 {
      %cst_16 = arith.constant 0.000000e+00 : f32
      %25 = vector.broadcast %cst_16 : f32 to vector<1x128xf32>
      %c0_17 = arith.constant 0 : index
      %c0_18 = arith.constant 0 : index
      %26 = vector.load %arg10[%c0_17, %c0_18] : memref<1x128xf32, #tpu.memory_space<vmem>>, vector<1x128xf32>
      tpu.vector_store %arg10[%c0_17, %c0_18], %25 {strides = array<i32>} : memref<1x128xf32, #tpu.memory_space<vmem>>, vector<1x128xf32>,
      %cst_19 = arith.constant 0.000000e+00 : f32
      %27 = vector.broadcast %cst_19 : f32 to vector<1x128xf32>
      %c0_20 = arith.constant 0 : index
      %c0_21 = arith.constant 0 : index
      %28 = vector.load %arg11[%c0_20, %c0_21] : memref<1x128xf32, #tpu.memory_space<vmem>>, vector<1x128xf32>
      tpu.vector_store %arg11[%c0_20, %c0_21], %27 {strides = array<i32>} : memref<1x128xf32, #tpu.memory_space<vmem>>, vector<1x128xf32>,
    } else {
    }
    %c0_i32_13 = arith.constant 0 : i32
    %19 = arith.cmpi eq, %arg0, %c0_i32_13 : i32
    %20 = arith.extui %19 : i1 to i32
    %c0_i32_14 = arith.constant 0 : i32
    %21 = arith.cmpi ne, %20, %c0_i32_14 : i32
    scf.if %21 {
      %c8_i32 = arith.constant 8 : i32
      %25 = arith.muli %arg1, %c8_i32 : i32
      %26 = tpu.iota {dimensions = array<i32: 0>} : vector<8x1xi32>
      %27 = vector.broadcast %25 : i32 to vector<8x1xi32>
      %28 = arith.addi %27, %26 : vector<8x1xi32>
      %c30_i32 = arith.constant 30 : i32
      %29 = vector.broadcast %c30_i32 : i32 to vector<8x1xi32>
      %30 = arith.cmpi slt, %28, %29 : vector<8x1xi32>
      %31 = arith.extui %30 : vector<8x1xi1> to vector<8x1xi32>
      %32 = arith.sitofp %31 : vector<8x1xi32> to vector<8x1xf32>
      %33 = vector.broadcast %32 : vector<8x1xf32> to vector<8x128xf32>
      %34 = arith.mulf %13, %33 : vector<8x128xf32>
      %c0_16 = arith.constant 0 : index
      %c0_17 = arith.constant 0 : index
      %35 = vector.load %arg10[%c0_16, %c0_17] : memref<1x128xf32, #tpu.memory_space<vmem>>, vector<1x128xf32>
      %cst_18 = arith.constant dense<0.000000e+00> : vector<128xf32>
      %36 = vector.multi_reduction <add>, %34, %cst_18 [0] : vector<8x128xf32> to vector<128xf32>
      %37 = vector.shape_cast %36 : vector<128xf32> to vector<1x128xf32>
      %38 = arith.addf %35, %37 : vector<1x128xf32>
      %c0_19 = arith.constant 0 : index
      %c0_20 = arith.constant 0 : index
      %39 = vector.load %arg10[%c0_19, %c0_20] : memref<1x128xf32, #tpu.memory_space<vmem>>, vector<1x128xf32>
      tpu.vector_store %arg10[%c0_19, %c0_20], %38 {strides = array<i32>} : memref<1x128xf32, #tpu.memory_space<vmem>>, vector<1x128xf32>,
      %c0_21 = arith.constant 0 : index
      %c0_22 = arith.constant 0 : index
      %40 = vector.load %arg11[%c0_21, %c0_22] : memref<1x128xf32, #tpu.memory_space<vmem>>, vector<1x128xf32>
      %41 = arith.mulf %34, %13 : vector<8x128xf32>
      %cst_23 = arith.constant dense<0.000000e+00> : vector<128xf32>
      %42 = vector.multi_reduction <add>, %41, %cst_23 [0] : vector<8x128xf32> to vector<128xf32>
      %43 = vector.shape_cast %42 : vector<128xf32> to vector<1x128xf32>
      %44 = arith.addf %40, %43 : vector<1x128xf32>
      %c0_24 = arith.constant 0 : index
      %c0_25 = arith.constant 0 : index
      %45 = vector.load %arg11[%c0_24, %c0_25] : memref<1x128xf32, #tpu.memory_space<vmem>>, vector<1x128xf32>
      tpu.vector_store %arg11[%c0_24, %c0_25], %44 {strides = array<i32>} : memref<1x128xf32, #tpu.memory_space<vmem>>, vector<1x128xf32>,
      %cst_26 = arith.constant 0.000000e+00 : f32
      %46 = vector.broadcast %cst_26 : f32 to vector<8x128xf32>
      %c0_27 = arith.constant 0 : index
      %c0_28 = arith.constant 0 : index
      %47 = vector.load %arg9[%c0_27, %c0_28] : memref<8x128xf32, #tpu.memory_space<vmem>>, vector<8x128xf32>
      tpu.vector_store %arg9[%c0_27, %c0_28], %46 {strides = array<i32>} : memref<8x128xf32, #tpu.memory_space<vmem>>, vector<8x128xf32>,
    } else {
    }
    %c1_i32 = arith.constant 1 : i32
    %22 = arith.cmpi eq, %arg0, %c1_i32 : i32
    %23 = arith.extui %22 : i1 to i32
    %c0_i32_15 = arith.constant 0 : i32
    %24 = arith.cmpi ne, %23, %c0_i32_15 : i32
    scf.if %24 {
      %c0_16 = arith.constant 0 : index
      %c0_17 = arith.constant 0 : index
      %25 = vector.load %arg10[%c0_16, %c0_17] : memref<1x128xf32, #tpu.memory_space<vmem>>, vector<1x128xf32>
      %cst_18 = arith.constant 0.0333333351 : f32
      %26 = vector.broadcast %cst_18 : f32 to vector<1x128xf32>
      %27 = arith.mulf %25, %26 : vector<1x128xf32>
      %c0_19 = arith.constant 0 : index
      %c0_20 = arith.constant 0 : index
      %28 = vector.load %arg11[%c0_19, %c0_20] : memref<1x128xf32, #tpu.memory_space<vmem>>, vector<1x128xf32>
      %cst_21 = arith.constant 0.0333333351 : f32
      %29 = vector.broadcast %cst_21 : f32 to vector<1x128xf32>
      %30 = arith.mulf %28, %29 : vector<1x128xf32>
      %31 = arith.mulf %27, %27 : vector<1x128xf32>
      %32 = arith.subf %30, %31 : vector<1x128xf32>
      %cst_22 = arith.constant 0.000000e+00 : f32
      %33 = vector.broadcast %cst_22 : f32 to vector<1x128xf32>
      %34 = arith.maximumf %32, %33 : vector<1x128xf32>
      %35 = vector.broadcast %27 : vector<1x128xf32> to vector<8x128xf32>
      %36 = arith.subf %13, %35 : vector<8x128xf32>
      %cst_23 = arith.constant 9.99999974E-6 : f32
      %37 = vector.broadcast %cst_23 : f32 to vector<1x128xf32>
      %38 = arith.addf %34, %37 : vector<1x128xf32>
      %39 = math.rsqrt %38 : vector<1x128xf32>
      %40 = vector.broadcast %39 : vector<1x128xf32> to vector<8x128xf32>
      %41 = arith.mulf %36, %40 : vector<8x128xf32>
      %c0_24 = arith.constant 0 : index
      %c0_25 = arith.constant 0 : index
      %42 = vector.load %arg7[%c0_24, %c0_25] : memref<1x128xf32, #tpu.memory_space<vmem>>, vector<1x128xf32>
      %43 = vector.broadcast %42 : vector<1x128xf32> to vector<8x128xf32>
      %44 = arith.mulf %41, %43 : vector<8x128xf32>
      %c0_26 = arith.constant 0 : index
      %c0_27 = arith.constant 0 : index
      %45 = vector.load %arg8[%c0_26, %c0_27] : memref<1x128xf32, #tpu.memory_space<vmem>>, vector<1x128xf32>
      %46 = vector.broadcast %45 : vector<1x128xf32> to vector<8x128xf32>
      %47 = arith.addf %44, %46 : vector<8x128xf32>
      %48 = vector.extract_strided_slice %2 {offsets = [0, 128], sizes = [8, 128], strides = [1, 1]} : vector<8x256xf32> to vector<8x128xf32>
      %49 = arith.addf %48, %47 : vector<8x128xf32>
      %cst_28 = arith.constant 0.000000e+00 : f32
      %50 = vector.broadcast %cst_28 : f32 to vector<8x128xf32>
      %51 = arith.maximumf %49, %50 : vector<8x128xf32>
      %c0_29 = arith.constant 0 : index
      %c0_30 = arith.constant 0 : index
      %52 = vector.load %arg9[%c0_29, %c0_30] : memref<8x128xf32, #tpu.memory_space<vmem>>, vector<8x128xf32>
      tpu.vector_store %arg9[%c0_29, %c0_30], %51 {strides = array<i32>} : memref<8x128xf32, #tpu.memory_space<vmem>>, vector<8x128xf32>,
    } else {
    }
    return
  }
  func.func @transform_0(%arg0: i32, %arg1: i32) -> (i32, i32) {
    %c0_i32 = arith.constant 0 : i32
    %c0_i32_0 = arith.constant 0 : i32
    return %arg1, %c0_i32 : i32, i32
  }
  func.func @transform_1(%arg0: i32, %arg1: i32) -> (i32, i32) {
    %c0_i32 = arith.constant 0 : i32
    %c0_i32_0 = arith.constant 0 : i32
    %c0_i32_1 = arith.constant 0 : i32
    return %c0_i32, %c0_i32_0 : i32, i32
  }
  func.func @transform_2(%arg0: i32, %arg1: i32) -> (i32, i32) {
    %c0_i32 = arith.constant 0 : i32
    %c0_i32_0 = arith.constant 0 : i32
    %c0_i32_1 = arith.constant 0 : i32
    return %c0_i32, %c0_i32_0 : i32, i32
  }
  func.func @transform_3(%arg0: i32, %arg1: i32) -> (i32, i32) {
    %c0_i32 = arith.constant 0 : i32
    %c0_i32_0 = arith.constant 0 : i32
    %c0_i32_1 = arith.constant 0 : i32
    return %c0_i32, %c0_i32_0 : i32, i32
  }
  func.func @transform_4(%arg0: i32, %arg1: i32) -> (i32, i32) {
    %c0_i32 = arith.constant 0 : i32
    %c0_i32_0 = arith.constant 0 : i32
    %c0_i32_1 = arith.constant 0 : i32
    return %c0_i32, %c0_i32_0 : i32, i32
  }
  func.func @transform_5(%arg0: i32, %arg1: i32) -> (i32, i32) {
    %c0_i32 = arith.constant 0 : i32
    %c0_i32_0 = arith.constant 0 : i32
    %c0_i32_1 = arith.constant 0 : i32
    return %c0_i32, %c0_i32_0 : i32, i32
  }
  func.func @transform_6(%arg0: i32, %arg1: i32) -> (i32, i32) {
    %c0_i32 = arith.constant 0 : i32
    %c0_i32_0 = arith.constant 0 : i32
    %c0_i32_1 = arith.constant 0 : i32
    return %c0_i32, %c0_i32_0 : i32, i32
  }
  func.func @transform_7(%arg0: i32, %arg1: i32) -> (i32, i32) {
    %c0_i32 = arith.constant 0 : i32
    %c0_i32_0 = arith.constant 0 : i32
    return %arg1, %c0_i32 : i32, i32
  }
}

</mosaic_0001>

<llo_original>
// kernel: tpu_custom_call.1
$region0: #{tpu_custom_call.1}
  #allocation0 [shape = 'u32[]', space=smem, size = 0x4, offset = 0x4, fixed_abs, tag = 'smem constant byte address 0x4 - core index']
  #allocation1 [shape = 'u32[144,128]{1,0:T(1,128)}', space=vmem, size = 0x12000, scoped, tag = 'internal scratch']
  #allocation2 [shape = 'f32[1,128]{1,0:T(1,128)}', space=vmem, size = 0x200, scoped, tag = 'scratch operand']
  #allocation3 [shape = 'f32[1,128]{1,0:T(1,128)}', space=vmem, size = 0x200, scoped, tag = 'scratch operand']
  %s0 = inlined_call_operand.hbm [shape: f32[32,32], index: 0, kind: input, shape index: {}]
  %s1 = inlined_call_operand.hbm [shape: f32[32,256], index: 1, kind: input, shape index: {}]
  %s2 = inlined_call_operand.vmem [shape: f32[1,128], index: 2, kind: input, shape index: {}]
  %s3 = inlined_call_operand.hbm [shape: f32[128,128], index: 3, kind: input, shape index: {}]
  %s4 = inlined_call_operand.vmem [shape: f32[1,128], index: 4, kind: input, shape index: {}]
  %s5 = inlined_call_operand.vmem [shape: f32[1,128], index: 5, kind: input, shape index: {}]
  %s6 = inlined_call_operand.vmem [shape: f32[1,128], index: 6, kind: input, shape index: {}]
  %s7 = inlined_call_operand.hbm [shape: f32[32,128], index: 7, kind: output, shape index: {}]
  %s8 = sld [smem:[#allocation0]]
  $region85: #{tpu_custom_call.1} parent=0
    _
  %s10 = ssub.s32 1, %s8
  %s11 = scalar_select 0, %s10, %s8
  $region1: #{tpu_custom_call.1} parent=0
    #allocation4 [shape = 'u8[8192]{0}', space=vmem, size = 0x2000, scoped, tag = 'input window, operand 0']
    #allocation5 [shape = 's32[2]{0}', space=sflag, size = 0x8, scoped, tag = 'scoped memory for tpu_custom_call.1']
    #allocation6 [shape = 's32[2]{0}', space=sflag, size = 0x8, scoped, tag = 'scoped memory for tpu_custom_call.1']
    #allocation7 [shape = 'u8[32768]{0}', space=vmem, size = 0x8000, scoped, tag = 'input window, operand 1, single buffered']
    #allocation8 [shape = 's32[1]{0}', space=sflag, size = 0x4, scoped, tag = 'scoped memory for tpu_custom_call.1']
    #allocation9 [shape = 'u8[65536]{0}', space=vmem, size = 0x10000, scoped, tag = 'input window, operand 3, single buffered']
    #allocation10 [shape = 'u8[8192]{0}', space=vmem, size = 0x2000, scoped, tag = 'output window, operand 0']
    %12 = vsyncpa [#allocation5], 0
    %s13 = scalar_lea.sflag [#allocation5], 1
    %14 = vsyncpa %s13, 0
    %15 = vsyncpa [#allocation8], 0
    %16 = vsyncpa [#allocation6], 0
    %s17 = scalar_lea.sflag [#allocation6], 1
    %18 = vsyncpa %s17, 0
    loop: start=0, step=1, limit=10
    $region2: #{tpu_custom_call.1} parent=1 // loop_pre_header
      _
    $region3: #{tpu_custom_call.1} parent=1 // loop_header
      %s20 = sphi 0, %s24
      %p21 = scmp.ge.s32.totalorder %s20, 10
      %s27 = sphi 0, %s39
      %s28 = sphi 0, %s35
      %s29 = sphi 0, %s27
      %s30 = sphi 0, %s28
      %s31 = sphi 0, %s29
      %s32 = sphi 0, %s30
      %s42 = sphi 0, %s44
      %s45 = sphi 0, %s42
      %s46 = sphi 0, %s45
      %s62 = sphi 0, %s46
      %s66 = sphi 0, %s66
      %s68 = sphi 0, %s66
      %s69 = sphi 0, %s68
      %s83 = sphi 0, %s69
      %s87 = sphi 0, %s87
      %s89 = sphi 0, %s87
      %s90 = sphi 0, %s89
      %s104 = sphi 0, %s90
      %s108 = sphi 0, %s108
      %s110 = sphi 0, %s108
      %s111 = sphi 0, %s110
      %s125 = sphi 0, %s111
      %s129 = sphi 0, %s129
      %s131 = sphi 0, %s129
      %s132 = sphi 0, %s131
      %s146 = sphi 0, %s132
      %s150 = sphi 0, %s150
      %s152 = sphi 0, %s150
      %s153 = sphi 0, %s152
      %s167 = sphi 0, %s153
      %s171 = sphi 0, %s171
      %s173 = sphi 0, %s171
      %s174 = sphi 0, %s173
      %s188 = sphi 0, %s174
      %s194 = sphi 0, %s196
      %s197 = sphi 0, %s194
      %s198 = sphi 0, %s197
      %s214 = sphi 0, %s198
    $region4: #{tpu_custom_call.1} parent=1 // loop_header_branch
      %23 = sbr.rel (%p21) target = $region8
    $region5: #{tpu_custom_call.1} parent=1 // loop_body
      %s25 = ssub.s32 %s20, 1
      %s26 = ssub.s32 %s20, 2
      %s33 = sadd.s32 1, %s28
      %p34 = scmp.ge.s32.totalorder %s33, 4
      %s35 = scalar_select %p34, 0, %s33
      %s36 = sadd.s32 1, %s27
      %s37 = scalar_select %p34, %s36, %s27
      %p38 = scmp.ge.s32.totalorder %s37, 2
      %s39 = scalar_select %p38, 0, %s37
      %s40 = ssub.s32 %s28, %s35
      %p41 = scmp.eq.s32.totalorder %s40, 0
      %s43 = sadd.s32 %s42, 1
      %s44 = scalar_select %p41, %s42, %s43
      %p47 = pneg %p41
      %p48 = scmp.eq.s32.totalorder %s20, 7
      %p49 = por %p47, %p48
      %p50 = scmp.ne.s32.totalorder %s42, %s45
      %p51 = scmp.eq.s32.totalorder %s20, 0
      %p52 = por %p50, %p51
      %p53 = scmp.ne.s32.totalorder %s42, %s45
      %p54 = scmp.eq.s32.totalorder %s25, 7
      %p55 = por %p53, %p54
      %p56 = scmp.ne.s32.totalorder %s45, %s46
      %p57 = scmp.eq.s32.totalorder %s25, 0
      %p58 = por %p56, %p57
      %p59 = scmp.ne.s32.totalorder %s45, %s46
      %p60 = scmp.eq.s32.totalorder %s26, 7
      %p61 = por %p59, %p60
      %p63 = scmp.ne.s32.totalorder %s46, %s62
      %p64 = scmp.eq.s32.totalorder %s26, 0
      %p65 = por %p63, %p64
      %s67 = sadd.s32 %s66, 1
      %p70 = scmp.eq.s32.totalorder %s20, 7
      %p71 = scmp.ne.s32.totalorder %s66, %s68
      %p72 = scmp.eq.s32.totalorder %s20, 0
      %p73 = por %p71, %p72
      %p74 = scmp.ne.s32.totalorder %s66, %s68
      %p75 = scmp.eq.s32.totalorder %s25, 7
      %p76 = por %p74, %p75
      %p77 = scmp.ne.s32.totalorder %s68, %s69
      %p78 = scmp.eq.s32.totalorder %s25, 0
      %p79 = por %p77, %p78
      %p80 = scmp.ne.s32.totalorder %s68, %s69
      %p81 = scmp.eq.s32.totalorder %s26, 7
      %p82 = por %p80, %p81
      %p84 = scmp.ne.s32.totalorder %s69, %s83
      %p85 = scmp.eq.s32.totalorder %s26, 0
      %p86 = por %p84, %p85
      %s88 = sadd.s32 %s87, 1
      %p91 = scmp.eq.s32.totalorder %s20, 7
      %p92 = scmp.ne.s32.totalorder %s87, %s89
      %p93 = scmp.eq.s32.totalorder %s20, 0
      %p94 = por %p92, %p93
      %p95 = scmp.ne.s32.totalorder %s87, %s89
      %p96 = scmp.eq.s32.totalorder %s25, 7
      %p97 = por %p95, %p96
      %p98 = scmp.ne.s32.totalorder %s89, %s90
      %p99 = scmp.eq.s32.totalorder %s25, 0
      %p100 = por %p98, %p99
      %p101 = scmp.ne.s32.totalorder %s89, %s90
      %p102 = scmp.eq.s32.totalorder %s26, 7
      %p103 = por %p101, %p102
      %p105 = scmp.ne.s32.totalorder %s90, %s104
      %p106 = scmp.eq.s32.totalorder %s26, 0
      %p107 = por %p105, %p106
      %s109 = sadd.s32 %s108, 1
      %p112 = scmp.eq.s32.totalorder %s20, 7
      %p113 = scmp.ne.s32.totalorder %s108, %s110
      %p114 = scmp.eq.s32.totalorder %s20, 0
      %p115 = por %p113, %p114
      %p116 = scmp.ne.s32.totalorder %s108, %s110
      %p117 = scmp.eq.s32.totalorder %s25, 7
      %p118 = por %p116, %p117
      %p119 = scmp.ne.s32.totalorder %s110, %s111
      %p120 = scmp.eq.s32.totalorder %s25, 0
      %p121 = por %p119, %p120
      %p122 = scmp.ne.s32.totalorder %s110, %s111
      %p123 = scmp.eq.s32.totalorder %s26, 7
      %p124 = por %p122, %p123
      %p126 = scmp.ne.s32.totalorder %s111, %s125
      %p127 = scmp.eq.s32.totalorder %s26, 0
      %p128 = por %p126, %p127
      %s130 = sadd.s32 %s129, 1
      %p133 = scmp.eq.s32.totalorder %s20, 7
      %p134 = scmp.ne.s32.totalorder %s129, %s131
      %p135 = scmp.eq.s32.totalorder %s20, 0
      %p136 = por %p134, %p135
      %p137 = scmp.ne.s32.totalorder %s129, %s131
      %p138 = scmp.eq.s32.totalorder %s25, 7
      %p139 = por %p137, %p138
      %p140 = scmp.ne.s32.totalorder %s131, %s132
      %p141 = scmp.eq.s32.totalorder %s25, 0
      %p142 = por %p140, %p141
      %p143 = scmp.ne.s32.totalorder %s131, %s132
      %p144 = scmp.eq.s32.totalorder %s26, 7
      %p145 = por %p143, %p144
      %p147 = scmp.ne.s32.totalorder %s132, %s146
      %p148 = scmp.eq.s32.totalorder %s26, 0
      %p149 = por %p147, %p148
      %s151 = sadd.s32 %s150, 1
      %p154 = scmp.eq.s32.totalorder %s20, 7
      %p155 = scmp.ne.s32.totalorder %s150, %s152
      %p156 = scmp.eq.s32.totalorder %s20, 0
      %p157 = por %p155, %p156
      %p158 = scmp.ne.s32.totalorder %s150, %s152
      %p159 = scmp.eq.s32.totalorder %s25, 7
      %p160 = por %p158, %p159
      %p161 = scmp.ne.s32.totalorder %s152, %s153
      %p162 = scmp.eq.s32.totalorder %s25, 0
      %p163 = por %p161, %p162
      %p164 = scmp.ne.s32.totalorder %s152, %s153
      %p165 = scmp.eq.s32.totalorder %s26, 7
      %p166 = por %p164, %p165
      %p168 = scmp.ne.s32.totalorder %s153, %s167
      %p169 = scmp.eq.s32.totalorder %s26, 0
      %p170 = por %p168, %p169
      %s172 = sadd.s32 %s171, 1
      %p175 = scmp.eq.s32.totalorder %s20, 7
      %p176 = scmp.ne.s32.totalorder %s171, %s173
      %p177 = scmp.eq.s32.totalorder %s20, 0
      %p178 = por %p176, %p177
      %p179 = scmp.ne.s32.totalorder %s171, %s173
      %p180 = scmp.eq.s32.totalorder %s25, 7
      %p181 = por %p179, %p180
      %p182 = scmp.ne.s32.totalorder %s173, %s174
      %p183 = scmp.eq.s32.totalorder %s25, 0
      %p184 = por %p182, %p183
      %p185 = scmp.ne.s32.totalorder %s173, %s174
      %p186 = scmp.eq.s32.totalorder %s26, 7
      %p187 = por %p185, %p186
      %p189 = scmp.ne.s32.totalorder %s174, %s188
      %p190 = scmp.eq.s32.totalorder %s26, 0
      %p191 = por %p189, %p190
      %s192 = ssub.s32 %s28, %s35
      %p193 = scmp.eq.s32.totalorder %s192, 0
      %s195 = sadd.s32 %s194, 1
      %s196 = scalar_select %p193, %s194, %s195
      %p199 = pneg %p193
      %p200 = scmp.eq.s32.totalorder %s20, 7
      %p201 = por %p199, %p200
      %p202 = scmp.ne.s32.totalorder %s194, %s197
      %p203 = scmp.eq.s32.totalorder %s20, 0
      %p204 = por %p202, %p203
      %p205 = scmp.ne.s32.totalorder %s194, %s197
      %p206 = scmp.eq.s32.totalorder %s25, 7
      %p207 = por %p205, %p206
      %p208 = scmp.ne.s32.totalorder %s197, %s198
      %p209 = scmp.eq.s32.totalorder %s25, 0
      %p210 = por %p208, %p209
      %p211 = scmp.ne.s32.totalorder %s197, %s198
      %p212 = scmp.eq.s32.totalorder %s26, 7
      %p213 = por %p211, %p212
      %p215 = scmp.ne.s32.totalorder %s198, %s214
      %p216 = scmp.eq.s32.totalorder %s26, 0
      %p217 = por %p215, %p216
      %p218 = scmp.le.s32.totalorder 1, %s20
      %p219 = scmp.lt.s32.totalorder %s20, 9
      %p220 = pnand %p218, %p219
      %p221 = pneg %p220
      // Predicated region
      $region9: #{tpu_custom_call.1} parent=5 // pred_check
        _
      $region10: #{tpu_custom_call.1} parent=5 // pred_check_branch
        %223 = sbr.rel (%p220) target = $region12
      $region11: #{tpu_custom_call.1} parent=5 // pred_region
        %s224 = ssub.s32 %s20, 1
        // Predicated region
        $region13: #{tpu_custom_call.1} parent=11 // pred_check
          %p225 = pneg %p79
        $region14: #{tpu_custom_call.1} parent=11 // pred_check_branch
          %227 = sbr.rel (%p225) target = $region16
        $region15: #{tpu_custom_call.1} parent=11 // pred_region
          %s229 = ssub.s32 1024, 1024
          %230 = vsyncadd [#allocation8], %s229
          %s231 = sshll.u32 [#allocation7], 4
          %s232 = int_to_ptr.vmem [resolvable:$true] %s231
          %237 = dma.hbm_to_vmem [thread:$0]  %s1, 1024, %s232, [#allocation8], 256, 256, 16
        $region16: #{tpu_custom_call.1} parent=11 // pred_fallthru
          _
        // Predicated region
        $region17: #{tpu_custom_call.1} parent=11 // pred_check
          %p238 = pneg %p100
        $region18: #{tpu_custom_call.1} parent=11 // pred_check_branch
          %240 = sbr.rel (%p238) target = $region20
        $region19: #{tpu_custom_call.1} parent=11 // pred_region
          _
        $region20: #{tpu_custom_call.1} parent=11 // pred_fallthru
          _
        // Predicated region
        $region21: #{tpu_custom_call.1} parent=11 // pred_check
          %p241 = pneg %p121
        $region22: #{tpu_custom_call.1} parent=11 // pred_check_branch
          %243 = sbr.rel (%p241) target = $region24
        $region23: #{tpu_custom_call.1} parent=11 // pred_region
          %s245 = ssub.s32 2048, 2048
          %246 = vsyncadd [#allocation8], %s245
          %s247 = sshll.u32 [#allocation9], 4
          %s248 = int_to_ptr.vmem [resolvable:$true] %s247
          %253 = dma.hbm_to_vmem [thread:$0]  %s3, 2048, %s248, [#allocation8], 128, 128, 8
        $region24: #{tpu_custom_call.1} parent=11 // pred_fallthru
          _
        // Predicated region
        $region25: #{tpu_custom_call.1} parent=11 // pred_check
          %p254 = pneg %p142
        $region26: #{tpu_custom_call.1} parent=11 // pred_check_branch
          %256 = sbr.rel (%p254) target = $region28
        $region27: #{tpu_custom_call.1} parent=11 // pred_region
          _
        $region28: #{tpu_custom_call.1} parent=11 // pred_fallthru
          _
        // Predicated region
        $region29: #{tpu_custom_call.1} parent=11 // pred_check
          %p257 = pneg %p163
        $region30: #{tpu_custom_call.1} parent=11 // pred_check_branch
          %259 = sbr.rel (%p257) target = $region32
        $region31: #{tpu_custom_call.1} parent=11 // pred_region
          _
        $region32: #{tpu_custom_call.1} parent=11 // pred_fallthru
          _
        // Predicated region
        $region33: #{tpu_custom_call.1} parent=11 // pred_check
          %p260 = pneg %p184
        $region34: #{tpu_custom_call.1} parent=11 // pred_check_branch
          %262 = sbr.rel (%p260) target = $region36
        $region35: #{tpu_custom_call.1} parent=11 // pred_region
          _
        $region36: #{tpu_custom_call.1} parent=11 // pred_fallthru
          _
      $region12: #{tpu_custom_call.1} parent=5 // pred_fallthru
        _
      %p263 = scmp.lt.s32.totalorder %s20, 8
      // Predicated region
      $region37: #{tpu_custom_call.1} parent=5 // pred_check
        %p264 = pneg %p263
      $region38: #{tpu_custom_call.1} parent=5 // pred_check_branch
        %266 = sbr.rel (%p264) target = $region40
      $region39: #{tpu_custom_call.1} parent=5 // pred_region
        // Predicated region
        $region41: #{tpu_custom_call.1} parent=39 // pred_check
          %p267 = pneg %p52
        $region42: #{tpu_custom_call.1} parent=39 // pred_check_branch
          %269 = sbr.rel (%p267) target = $region44
        $region43: #{tpu_custom_call.1} parent=39 // pred_region
          %s270 = sand.u32 %s42, 1
          %s271 = scalar_lea.sflag [#allocation5], %s270
          %s272 = sand.u32 %s42, 1
          %s273 = smul.addr %s272, 8
          %s274 = scalar_lea.vmem [#allocation4], %s273
          %s276 = ssub.s32 128, 128
          %277 = vsyncadd %s271, %s276
          %s278 = smul.addr %s28, 128
          %s279 = scalar_lea.hbm %s0, %s278
          %s281 = sshll.u32 %s274, 4
          %s282 = int_to_ptr.vmem [resolvable:$true] %s281
          %284 = dma.hbm_to_vmem [thread:$0]  %s279, 128, %s282, %s271
        $region44: #{tpu_custom_call.1} parent=39 // pred_fallthru
          _
      $region40: #{tpu_custom_call.1} parent=5 // pred_fallthru
        _
      %p285 = scmp.le.s32.totalorder 1, %s20
      %p286 = scmp.lt.s32.totalorder %s20, 9
      %p287 = pnand %p285, %p286
      %p288 = pneg %p287
      // Predicated region
      $region45: #{tpu_custom_call.1} parent=5 // pred_check
        _
      $region46: #{tpu_custom_call.1} parent=5 // pred_check_branch
        %290 = sbr.rel (%p287) target = $region48
      $region47: #{tpu_custom_call.1} parent=5 // pred_region
        %s291 = ssub.s32 %s20, 1
        %s292 = sand.u32 %s45, 1
        %s293 = scalar_lea.sflag [#allocation5], %s292
        %s294 = sand.u32 %s45, 1
        %s295 = smul.addr %s294, 8
        %s296 = scalar_lea.vmem [#allocation4], %s295
        // Predicated region
        $region49: #{tpu_custom_call.1} parent=47 // pred_check
          %p297 = pneg %p58
        $region50: #{tpu_custom_call.1} parent=47 // pred_check_branch
          %299 = sbr.rel (%p297) target = $region52
        $region51: #{tpu_custom_call.1} parent=47 // pred_region
          %300 = dma.done %s293, 128
        $region52: #{tpu_custom_call.1} parent=47 // pred_fallthru
          _
        // Predicated region
        $region53: #{tpu_custom_call.1} parent=47 // pred_check
          %p301 = pneg %p79
        $region54: #{tpu_custom_call.1} parent=47 // pred_check_branch
          %303 = sbr.rel (%p301) target = $region56
        $region55: #{tpu_custom_call.1} parent=47 // pred_region
          %304 = dma.done [#allocation8], 1024
        $region56: #{tpu_custom_call.1} parent=47 // pred_fallthru
          _
        // Predicated region
        $region57: #{tpu_custom_call.1} parent=47 // pred_check
          %p305 = pneg %p121
        $region58: #{tpu_custom_call.1} parent=47 // pred_check_branch
          %307 = sbr.rel (%p305) target = $region60
        $region59: #{tpu_custom_call.1} parent=47 // pred_region
          %308 = dma.done [#allocation8], 2048
        $region60: #{tpu_custom_call.1} parent=47 // pred_fallthru
          _
        %s309 = sand.u32 %s45, 1
        %s310 = scalar_lea.sflag [#allocation5], %s309
        %s311 = sand.u32 %s45, 1
        %s312 = smul.addr %s311, 8
        %s313 = scalar_lea.vmem [#allocation4], %s312
        %p314 = pneg %p58
        %p315 = pneg %p55
        %p316 = pneg %p79
        %p317 = pneg %p76
        %p318 = pneg %p100
        %p319 = pneg %p97
        %p320 = pneg %p121
        %p321 = pneg %p118
        %p322 = pneg %p142
        %p323 = pneg %p139
        %p324 = pneg %p163
        %p325 = pneg %p160
        %p326 = pneg %p184
        %p327 = pneg %p181
        %p328 = pneg %p210
        %p329 = pneg %p207
        %s330 = sand.u32 %s197, 1
        %s331 = scalar_lea.sflag [#allocation6], %s330
        %s332 = sand.u32 %s197, 1
        %s333 = smul.addr %s332, 8
        %s334 = scalar_lea.vmem [#allocation10], %s333
        %v335 = vld [vmem:[%s296] sm:$0xff]
        %v336 = vld [vmem:[#allocation7] sm:$0xff]
        %v337 = vld [vmem:[#allocation7 + $0x8] sm:$0xff]
        %v338 = vld [vmem:[#allocation7 + $0x10] sm:$0xff]
        %v339 = vld [vmem:[#allocation7 + $0x18] sm:$0xff]
        %v340 = vld [vmem:[#allocation7 + $0x20] sm:$0xff]
        %v341 = vld [vmem:[#allocation7 + $0x28] sm:$0xff]
        %v342 = vld [vmem:[#allocation7 + $0x30] sm:$0xff]
        %v343 = vld [vmem:[#allocation7 + $0x38] sm:$0xff]
        %vm344 = vcmask 261120
        %v346 = vsel %vm344, %v335, 0
        %348 = vmatprep.subr.mxu0 %v337
        %349 = vmatpush1.msra.mxu0 %v336
        %350 = vmatprep.subr.mxu0 %v339
        %351 = vmatpush1.msra.mxu0 %v338
        %352 = vmatprep.subr.mxu0 %v341
        %353 = vmatpush1.msra.mxu0 %v340
        %354 = vmatprep.subr.mxu0 %v343
        %355 = vmatpush1.msra.mxu0 %v342
        %356 = vmatprep.subr.mxu0 0.0
        %357 = vmatpush1.msra.mxu0 0.0
        %358 = vmatprep.subr.mxu0 0.0
        %359 = vmatpush1.msra.mxu0 0.0
        %360 = vmatprep.subr.mxu0 0.0
        %361 = vmatpush1.msra.mxu0 0.0
        %362 = vmatprep.subr.mxu0 0.0
        %363 = vmatpush1.msra.mxu0 0.0
        %364 = vmatprep.subr.mxu0 0.0
        %365 = vmatpush1.msra.mxu0 0.0
        %366 = vmatprep.subr.mxu0 0.0
        %367 = vmatpush1.msra.mxu0 0.0
        %368 = vmatprep.subr.mxu0 0.0
        %369 = vmatpush1.msra.mxu0 0.0
        %370 = vmatprep.subr.mxu0 0.0
        %371 = vmatpush1.msra.mxu0 0.0
        %372 = vmatprep.subr.mxu0 0.0
        %373 = vmatpush1.msra.mxu0 0.0
        %374 = vmatprep.subr.mxu0 0.0
        %375 = vmatpush1.msra.mxu0 0.0
        %376 = vmatprep.subr.mxu0 0.0
        %377 = vmatpush1.msra.mxu0 0.0
        %378 = vmatprep.subr.mxu0 0.0
        %379 = vmatpush1.msra.mxu0 0.0
        %380 = vmatprep.subr.mxu0 0.0
        %381 = vmatpush1.msra.mxu0 0.0
        %382 = vmatprep.subr.mxu0 0.0
        %383 = vmatpush1.msra.mxu0 0.0
        %384 = vmatprep.subr.mxu0 0.0
        %385 = vmatpush1.msra.mxu0 0.0
        %386 = vmatprep.subr.mxu0 0.0
        %387 = vmatpush1.msra.mxu0 0.0
        %388 = vmatprep.subr.mxu0 0.0
        %389 = vmatpush1.msra.mxu0 0.0
        %390 = vmatprep.subr.mxu0 0.0
        %391 = vmatpush1.msra.mxu0 0.0
        %392 = vmatprep.subr.mxu0 0.0
        %393 = vmatpush1.msra.mxu0 0.0
        %394 = vmatprep.subr.mxu0 0.0
        %395 = vmatpush1.msra.mxu0 0.0
        %396 = vmatprep.subr.mxu0 0.0
        %397 = vmatpush1.msra.mxu0 0.0
        %398 = vmatprep.subr.mxu0 0.0
        %399 = vmatpush1.msra.mxu0 0.0
        %400 = vmatprep.subr.mxu0 0.0
        %401 = vmatpush1.msra.mxu0 0.0
        %402 = vmatprep.subr.mxu0 0.0
        %403 = vmatpush1.msra.mxu0 0.0
        %404 = vmatprep.subr.mxu0 0.0
        %405 = vmatpush1.msra.mxu0 0.0
        %406 = vmatprep.subr.mxu0 0.0
        %407 = vmatpush1.msra.mxu0 0.0
        %408 = vmatprep.subr.mxu0 0.0
        %409 = vmatpush1.msra.mxu0 0.0
        %410 = vmatprep.subr.mxu0 0.0
        %411 = vmatpush1.msra.mxu0 0.0
        %412 = vmatprep.mubr.f32.mxu0 0.0
        %413 = vmatmul.mubr.f32.gmra.mrb[0].mxu0 %v346
        %v414 = vpop.f32.mrb[0].mxu0
        %v415 = vadd.f32 0.0, %v414
        %v416 = vpop.f32.mrb[0].mxu0
        %v417 = vadd.f32 0.0, %v416
        %418 = vdwg.mxu0
        %v419 = vld [vmem:[%s2] sm:$0x1]
        %v421 = vlaneseq
        %v422 = vshrl.u32 %v421, 7
        %v423 = vsub.s32 0, %v422
        %v424 = vrot.slane %v419, %v423
        %v426 = vadd.f32 %v415, %v424
        %v427 = vmax.f32 %v426, 0.0
        %v428 = vld [vmem:[#allocation9] sm:$0xff]
        %v429 = vld [vmem:[#allocation9 + $0x8] sm:$0xff]
        %v430 = vld [vmem:[#allocation9 + $0x10] sm:$0xff]
        %v431 = vld [vmem:[#allocation9 + $0x18] sm:$0xff]
        %v432 = vld [vmem:[#allocation9 + $0x20] sm:$0xff]
        %v433 = vld [vmem:[#allocation9 + $0x28] sm:$0xff]
        %v434 = vld [vmem:[#allocation9 + $0x30] sm:$0xff]
        %v435 = vld [vmem:[#allocation9 + $0x38] sm:$0xff]
        %v436 = vld [vmem:[#allocation9 + $0x40] sm:$0xff]
        %v437 = vld [vmem:[#allocation9 + $0x48] sm:$0xff]
        %v438 = vld [vmem:[#allocation9 + $0x50] sm:$0xff]
        %v439 = vld [vmem:[#allocation9 + $0x58] sm:$0xff]
        %v440 = vld [vmem:[#allocation9 + $0x60] sm:$0xff]
        %v441 = vld [vmem:[#allocation9 + $0x68] sm:$0xff]
        %v442 = vld [vmem:[#allocation9 + $0x70] sm:$0xff]
        %v443 = vld [vmem:[#allocation9 + $0x78] sm:$0xff]
        %v444 = vld [vmem:[%s4] sm:$0x1]
        %v446 = vlaneseq
        %v447 = vshrl.u32 %v446, 7
        %v448 = vsub.s32 0, %v447
        %v449 = vrot.slane %v444, %v448
        %451 = vmatprep.subr.mxu0 0.0
        %452 = vmatpush1.msra.mxu0 %v428
        %453 = vmatprep.subr.mxu0 0.0
        %454 = vmatpush1.msra.mxu0 %v429
        %455 = vmatprep.subr.mxu0 0.0
        %456 = vmatpush1.msra.mxu0 %v430
        %457 = vmatprep.subr.mxu0 0.0
        %458 = vmatpush1.msra.mxu0 %v431
        %459 = vmatprep.subr.mxu0 0.0
        %460 = vmatpush1.msra.mxu0 %v432
        %461 = vmatprep.subr.mxu0 0.0
        %462 = vmatpush1.msra.mxu0 %v433
        %463 = vmatprep.subr.mxu0 0.0
        %464 = vmatpush1.msra.mxu0 %v434
        %465 = vmatprep.subr.mxu0 0.0
        %466 = vmatpush1.msra.mxu0 %v435
        %467 = vmatprep.subr.mxu0 0.0
        %468 = vmatpush1.msra.mxu0 %v436
        %469 = vmatprep.subr.mxu0 0.0
        %470 = vmatpush1.msra.mxu0 %v437
        %471 = vmatprep.subr.mxu0 0.0
        %472 = vmatpush1.msra.mxu0 %v438
        %473 = vmatprep.subr.mxu0 0.0
        %474 = vmatpush1.msra.mxu0 %v439
        %475 = vmatprep.subr.mxu0 0.0
        %476 = vmatpush1.msra.mxu0 %v440
        %477 = vmatprep.subr.mxu0 0.0
        %478 = vmatpush1.msra.mxu0 %v441
        %479 = vmatprep.subr.mxu0 0.0
        %480 = vmatpush1.msra.mxu0 %v442
        %481 = vmatprep.subr.mxu0 0.0
        %482 = vmatpush1.msra.mxu0 %v443
        %483 = vmatprep.subr.mxu0 0.0
        %484 = vmatpush1.msra.mxu0 0.0
        %485 = vmatprep.subr.mxu0 0.0
        %486 = vmatpush1.msra.mxu0 0.0
        %487 = vmatprep.subr.mxu0 0.0
        %488 = vmatpush1.msra.mxu0 0.0
        %489 = vmatprep.subr.mxu0 0.0
        %490 = vmatpush1.msra.mxu0 0.0
        %491 = vmatprep.subr.mxu0 0.0
        %492 = vmatpush1.msra.mxu0 0.0
        %493 = vmatprep.subr.mxu0 0.0
        %494 = vmatpush1.msra.mxu0 0.0
        %495 = vmatprep.subr.mxu0 0.0
        %496 = vmatpush1.msra.mxu0 0.0
        %497 = vmatprep.subr.mxu0 0.0
        %498 = vmatpush1.msra.mxu0 0.0
        %499 = vmatprep.subr.mxu0 0.0
        %500 = vmatpush1.msra.mxu0 0.0
        %501 = vmatprep.subr.mxu0 0.0
        %502 = vmatpush1.msra.mxu0 0.0
        %503 = vmatprep.subr.mxu0 0.0
        %504 = vmatpush1.msra.mxu0 0.0
        %505 = vmatprep.subr.mxu0 0.0
        %506 = vmatpush1.msra.mxu0 0.0
        %507 = vmatprep.subr.mxu0 0.0
        %508 = vmatpush1.msra.mxu0 0.0
        %509 = vmatprep.subr.mxu0 0.0
        %510 = vmatpush1.msra.mxu0 0.0
        %511 = vmatprep.subr.mxu0 0.0
        %512 = vmatpush1.msra.mxu0 0.0
        %513 = vmatprep.subr.mxu0 0.0
        %514 = vmatpush1.msra.mxu0 0.0
        %515 = vmatprep.mubr.f32.mxu0 0.0
        %516 = vmatmul.mubr.f32.gmra.mrb[0].mxu0 %v427
        %v517 = vpop.f32.mrb[0].mxu0
        %v518 = vadd.f32 %v449, %v517
        %v519 = vpop.f32.mrb[0].mxu0
        %520 = vdwg.mxu0
        %p521 = scmp.eq.s32.totalorder %s29, 0
        %p522 = scmp.eq.s32.totalorder %s30, 0
        %p523 = pnand %p521, %p522
        %p524 = pneg %p523
        // Predicated region
        $region61: #{tpu_custom_call.1} parent=47 // pred_check
          _
        $region62: #{tpu_custom_call.1} parent=47 // pred_check_branch
          %526 = sbr.rel (%p523) target = $region64
        $region63: #{tpu_custom_call.1} parent=47 // pred_region
          %527 = vst [vmem:[#allocation2] sm:$0x1] 0.0
          %528 = vst [vmem:[#allocation3] sm:$0x1] 0.0
        $region64: #{tpu_custom_call.1} parent=47 // pred_fallthru
          _
        // Predicated region
        $region65: #{tpu_custom_call.1} parent=47 // pred_check
          %p529 = pneg %p521
        $region66: #{tpu_custom_call.1} parent=47 // pred_check_branch
          %531 = sbr.rel (%p529) target = $region68
        $region67: #{tpu_custom_call.1} parent=47 // pred_region
          %s532 = smul.u32 %s30, 8
          %v533 = vlaneseq
          %v534 = vshrl.u32 %v533, 7
          %v535 = vstv %s532
          %v536 = vadd.s32 %v535, %v534
          %vm537 = vcmp.lt.s32.totalorder %v536, 30
          %v538 = vsel %vm537, 1, 0
          %v539 = vcvt.s32.f32 %v538
          %v540 = vmul.f32 %v518, %v539
          %v541 = vld [vmem:[#allocation2] sm:$0x1]
          %v542 = vrot.slane %v540, 4
          %v543 = vadd.f32 %v540, %v542
          %v544 = vrot.slane %v543, 2
          %v545 = vadd.f32 %v543, %v544
          %v546 = vrot.slane %v545, 1
          %v547 = vadd.f32 %v545, %v546
          %v548 = vadd.f32 %v541, %v547
          %549 = vst [vmem:[#allocation2] sm:$0x1] %v548
          %v550 = vld [vmem:[#allocation3] sm:$0x1]
          %v551 = vmul.f32 %v540, %v518
          %v552 = vrot.slane %v551, 4
          %v553 = vadd.f32 %v551, %v552
          %v554 = vrot.slane %v553, 2
          %v555 = vadd.f32 %v553, %v554
          %v556 = vrot.slane %v555, 1
          %v557 = vadd.f32 %v555, %v556
          %v558 = vadd.f32 %v550, %v557
          %559 = vst [vmem:[#allocation3] sm:$0x1] %v558
          %560 = vst [vmem:[%s334] sm:$0xff] 0.0
        $region68: #{tpu_custom_call.1} parent=47 // pred_fallthru
          _
        %p561 = scmp.eq.s32.totalorder %s29, 1
        // Predicated region
        $region69: #{tpu_custom_call.1} parent=47 // pred_check
          %p562 = pneg %p561
        $region70: #{tpu_custom_call.1} parent=47 // pred_check_branch
          %564 = sbr.rel (%p562) target = $region72
        $region71: #{tpu_custom_call.1} parent=47 // pred_region
          %v565 = vld [vmem:[#allocation2] sm:$0x1]
          %v566 = vmul.f32 %v565, 0.033333335
          %v567 = vld [vmem:[#allocation3] sm:$0x1]
          %v568 = vmul.f32 %v567, 0.033333335
          %v569 = vmul.f32 %v566, %v566
          %v570 = vsub.f32 %v568, %v569
          %v571 = vmax.f32 %v570, 0.0
          %v573 = vlaneseq
          %v574 = vshrl.u32 %v573, 7
          %v575 = vsub.s32 0, %v574
          %v576 = vrot.slane %v566, %v575
          %v578 = vsub.f32 %v518, %v576
          %v579 = vadd.f32 %v571, 1e-05
          %v580 = vrsqrt.pop %v579
          %v582 = vlaneseq
          %v583 = vshrl.u32 %v582, 7
          %v584 = vsub.s32 0, %v583
          %v585 = vrot.slane %v580, %v584
          %v587 = vmul.f32 %v578, %v585
          %v588 = vld [vmem:[%s5] sm:$0x1]
          %v590 = vlaneseq
          %v591 = vshrl.u32 %v590, 7
          %v592 = vsub.s32 0, %v591
          %v593 = vrot.slane %v588, %v592
          %v595 = vmul.f32 %v587, %v593
          %v596 = vld [vmem:[%s6] sm:$0x1]
          %v598 = vlaneseq
          %v599 = vshrl.u32 %v598, 7
          %v600 = vsub.s32 0, %v599
          %v601 = vrot.slane %v596, %v600
          %v603 = vadd.f32 %v595, %v601
          %v604 = vadd.f32 %v417, %v603
          %v605 = vmax.f32 %v604, 0.0
          %606 = vst [vmem:[%s334] sm:$0xff] %v605
        $region72: #{tpu_custom_call.1} parent=47 // pred_fallthru
          _
        %s607 = sand.u32 %s197, 1
        %s608 = scalar_lea.sflag [#allocation6], %s607
        %s609 = sand.u32 %s197, 1
        %s610 = smul.addr %s609, 8
        %s611 = scalar_lea.vmem [#allocation10], %s610
        // Predicated region
        $region73: #{tpu_custom_call.1} parent=47 // pred_check
          %p612 = pneg %p207
        $region74: #{tpu_custom_call.1} parent=47 // pred_check_branch
          %614 = sbr.rel (%p612) target = $region76
        $region75: #{tpu_custom_call.1} parent=47 // pred_region
          %s616 = ssub.s32 128, 128
          %617 = vsyncadd %s608, %s616
          %s618 = smul.addr %s30, 128
          %s619 = scalar_lea.hbm %s7, %s618
          %s621 = sshll.u32 %s611, 4
          %s622 = int_to_ptr.vmem [resolvable:$true] %s621
          %624 = dma.vmem_to_hbm [thread:$0]  %s622, 128, %s619, %s608
        $region76: #{tpu_custom_call.1} parent=47 // pred_fallthru
          _
      $region48: #{tpu_custom_call.1} parent=5 // pred_fallthru
        _
      %p625 = scmp.le.s32.totalorder 2, %s20
      // Predicated region
      $region77: #{tpu_custom_call.1} parent=5 // pred_check
        %p626 = pneg %p625
      $region78: #{tpu_custom_call.1} parent=5 // pred_check_branch
        %628 = sbr.rel (%p626) target = $region80
      $region79: #{tpu_custom_call.1} parent=5 // pred_region
        %s629 = ssub.s32 %s20, 2
        // Predicated region
        $region81: #{tpu_custom_call.1} parent=79 // pred_check
          %p630 = pneg %p213
        $region82: #{tpu_custom_call.1} parent=79 // pred_check_branch
          %632 = sbr.rel (%p630) target = $region84
        $region83: #{tpu_custom_call.1} parent=79 // pred_region
          %s633 = sand.u32 %s198, 1
          %s634 = scalar_lea.sflag [#allocation6], %s633
          %s635 = sand.u32 %s198, 1
          %s636 = smul.addr %s635, 8
          %s637 = scalar_lea.vmem [#allocation10], %s636
          %638 = dma.done %s634, 128
        $region84: #{tpu_custom_call.1} parent=79 // pred_fallthru
          _
      $region80: #{tpu_custom_call.1} parent=5 // pred_fallthru
        _
    $region6: #{tpu_custom_call.1} parent=1 // loop_footer
      %s24 = sadd.s32 1, %s20
    $region7: #{tpu_custom_call.1} parent=1 // loop_footer_branch
      %19 = sbr.rel target = $region3
    $region8: #{tpu_custom_call.1} parent=1 // loop_exit
      _
    %639 = vsyncpa [#allocation5], 1
    %s640 = scalar_lea.sflag [#allocation5], 1
    %641 = vsyncpa %s640, 1
    %642 = vsyncpa [#allocation8], 1
    %643 = vsyncpa [#allocation6], 1
    %s644 = scalar_lea.sflag [#allocation6], 1
    %645 = vsyncpa %s644, 1

</llo_original>
